<compile_context>
chip_gen: v6e
topology: v6e:2x2x1
jax: 0.10.0
libtpu: 0.0.40
codegen_flags: <defaults>
</compile_context>

<pallas_src>
import jax
import jax.numpy as jnp
from jax import lax
from jax.experimental import pallas as pl
from jax.experimental.pallas import tpu as pltpu


HIDDEN_DIMS = (70, 28, 14, 7, 1)          # fc1, fc2, fc3, fc4, out
_TB_CANDIDATES = (8192, 4096, 2048, 1024, 512, 256)  # descending


def _round_up(n, m):
    return ((n + m - 1) // m) * m


def _pick_tile(B, max_block_b):
    """Pick a batch tile (multiple of 256) minimizing tail padding; prefer the
    largest tile on ties so per-grid-step overhead stays amortized."""
    best_tb, best_pad = None, None
    for t in _TB_CANDIDATES:
        if t > max_block_b:
            continue
        pad = _round_up(max(B, 1), t)
        if best_pad is None or pad < best_pad:
            best_tb, best_pad = t, pad
    if best_tb is None:                   # max_block_b < 256: fall back
        best_tb = 256
        best_pad = _round_up(max(B, 1), best_tb)
    return best_tb, best_pad


def mlp_kernel(x_ref,
               w1_ref, b1_ref,
               w2_ref, b2_ref,
               w3_ref, b3_ref,
               w4_ref, b4_ref,
               w5_ref, b5_ref,
               o_ref):
    """Fused 5-layer MLP forward for one batch tile, feature-major.

    x_ref:  (TB, flat_dim) f32                      (batch tile, streamed)
    w1..w5: PyTorch (out_features, in_features) f32 (VMEM-resident)
    b1..b5: (out_features, 1) f32                   (lane-broadcast columns)
    o_ref:  (1, TB) f32                             (lane-dense output row)

    All intermediates are h^T with shape (features, TB): batch on lanes,
    features on sublanes, so the MXU N-dim is always the full tile.
    """
    # Layer 1: h1^T = W1 @ x^T  via rhs-transposed contraction (no transpose
    # materialized): (70, flat) x (TB, flat) contracting last dims -> (70, TB).
    h = lax.dot_general(
        w1_ref[...], x_ref[...],
        dimension_numbers=(((1,), (1,)), ((), ())),
        preferred_element_type=jnp.float32)
    h = jnp.maximum(h + b1_ref[...], 0.0)                       # (70, TB)

    # Layers 2..4: plain (out,in) @ (in,TB) matmuls, lane-dense bias + ReLU.
    for w_ref, b_ref in ((w2_ref, b2_ref), (w3_ref, b3_ref), (w4_ref, b4_ref)):
        h = jnp.dot(w_ref[...], h, preferred_element_type=jnp.float32)
        h = jnp.maximum(h + b_ref[...], 0.0)                    # (out, TB)

    # Output layer: (1, 7) @ (7, TB) -> (1, TB) lane-dense row, no relayout.
    o_ref[...] = (jnp.dot(w5_ref[...], h, preferred_element_type=jnp.float32)
                  + b5_ref[...])


def mlp_forward(x, torch_params, *, max_block_b=8192):
    """x: (B, step, input_dim) f32.

    torch_params: list of (W, b) in PyTorch nn.Linear layout:
      W: (out_features, in_features), b: (out_features,)
    """
    B = x.shape[0]
    flat_dim = x.shape[1] * x.shape[2]
    x2d = x.reshape(B, flat_dim).astype(jnp.float32)   # same as torch .view

    tb, b_pad = _pick_tile(B, max_block_b)
    if b_pad != B:
        x2d = jnp.pad(x2d, ((0, b_pad - B), (0, 0)))
    num_tiles = b_pad // tb

    # Weights stay in PyTorch (out, in) layout (feature-major kernel needs no
    # transpose); biases become (out, 1) lane-broadcast columns.
    operands = [x2d]
    for w, b in torch_params:
        operands.append(jnp.asarray(w, jnp.float32))             # (out, in)
        operands.append(jnp.asarray(b, jnp.float32).reshape(-1, 1))  # (out, 1)

    # x tile streams per grid step; weights/biases keep a constant index_map
    # so Pallas fetches them once and keeps them VMEM-resident across steps.
    x_spec = pl.BlockSpec((tb, flat_dim), lambda i: (i, 0),
                          memory_space=pltpu.MemorySpace.VMEM)
    resident_specs = [
        pl.BlockSpec(a.shape, lambda i: (0, 0),
                     memory_space=pltpu.MemorySpace.VMEM)
        for a in operands[1:]
    ]
    in_specs = [x_spec] + resident_specs

    # Lane-dense output: (1, b_pad), one (1, tb) row per grid step.
    out_shape = jax.ShapeDtypeStruct((1, b_pad), jnp.float32)
    out_spec = pl.BlockSpec((1, tb), lambda i: (0, i),
                            memory_space=pltpu.MemorySpace.VMEM)

    dims = [flat_dim] + list(HIDDEN_DIMS)
    flops = 2 * b_pad * sum(a * c for a, c in zip(dims[:-1], dims[1:]))
    param_bytes = sum(int(a.size) * 4 for a in operands[1:])
    bytes_accessed = b_pad * flat_dim * 4 + b_pad * 4 + param_bytes

    out_row = pl.pallas_call(
        mlp_kernel,
        grid=(num_tiles,),
        in_specs=in_specs,
        out_specs=out_spec,
        out_shape=out_shape,
        compiler_params=pltpu.CompilerParams(
            dimension_semantics=("parallel",)),
        cost_estimate=pl.CostEstimate(flops=flops,
                                      transcendentals=0,
                                      bytes_accessed=bytes_accessed),
    )(*operands)

    # (1, b_pad) -> (b_pad, 1), drop padded rows (padded rows are nonzero but
    # are sliced off here, so they never leak out).
    return out_row.reshape(b_pad, 1)[:B]


def init_params(key, input_dim, step):
    """Deterministic init mimicking nn.Linear defaults, in PyTorch layout:
    W: (out, in) ~ U[-1/sqrt(fan_in), 1/sqrt(fan_in)], b: (out,)."""
    dims = [input_dim * step] + list(HIDDEN_DIMS)
    params = []
    for i in range(len(dims) - 1):
        fan_in, fan_out = dims[i], dims[i + 1]
        key, kw, kb = jax.random.split(key, 3)
        bound = 1.0 / jnp.sqrt(jnp.float32(fan_in))
        w = jax.random.uniform(kw, (fan_out, fan_in), jnp.float32, -bound, bound)
        b = jax.random.uniform(kb, (fan_out,), jnp.float32, -bound, bound)
        params.append((w, b))
    return params


def mlp_reference(x, torch_params):
    """Pure-JAX reference (nn.Linear semantics) for correctness checking."""
    B = x.shape[0]
    h = x.reshape(B, -1)
    for i, (w, b) in enumerate(torch_params):
        h = h @ w.T + b
        if i < len(torch_params) - 1:
            h = jnp.maximum(h, 0.0)
    return h


if __name__ == "__main__":
    key = jax.random.PRNGKey(0)
    B, step, input_dim = 8, 8, 4   # small synthetic shapes; flatten dim = 32

    k_x, k_p = jax.random.split(key)
    x = jax.random.normal(k_x, (B, step, input_dim), dtype=jnp.float32)
    params = init_params(k_p, input_dim, step)

    out = mlp_forward(x, params)
    out = jax.block_until_ready(out)

    ref = mlp_reference(x, params)
    assert out.shape == (B, 1), out.shape
    assert jnp.allclose(out, ref, atol=1e-5, rtol=1e-5), "mismatch vs reference"

    print("KERNEL_OK")
</pallas_src>

<mosaic_0001>
module attributes {stable_mosaic.version = 11 : i64} {
  func.func @mlp_kernel(%arg0: i32, %arg1: memref<256x32xf32, #tpu.memory_space<vmem>>, %arg2: memref<70x32xf32, #tpu.memory_space<vmem>>, %arg3: memref<70x1xf32, #tpu.memory_space<vmem>>, %arg4: memref<28x70xf32, #tpu.memory_space<vmem>>, %arg5: memref<28x1xf32, #tpu.memory_space<vmem>>, %arg6: memref<14x28xf32, #tpu.memory_space<vmem>>, %arg7: memref<14x1xf32, #tpu.memory_space<vmem>>, %arg8: memref<7x14xf32, #tpu.memory_space<vmem>>, %arg9: memref<7x1xf32, #tpu.memory_space<vmem>>, %arg10: memref<1x7xf32, #tpu.memory_space<vmem>>, %arg11: memref<1x1xf32, #tpu.memory_space<vmem>>, %arg12: memref<1x256xf32, #tpu.memory_space<vmem>>) attributes {dimension_semantics = [#tpu.dimension_semantics<parallel>], iteration_bounds = array<i64: 1>, scalar_prefetch = 0 : i64, scratch_operands = 0 : i64, tpu.core_type = #tpu.core_type<tc>, window_params = [{transform_indices = @transform_0, window_bounds = array<i64: 256, 32>}, {pipeline_mode = #tpu.pipeline_mode<synchronous>, transform_indices = @transform_1, window_bounds = array<i64: 70, 32>}, {pipeline_mode = #tpu.pipeline_mode<synchronous>, transform_indices = @transform_2, window_bounds = array<i64: 70, 1>}, {pipeline_mode = #tpu.pipeline_mode<synchronous>, transform_indices = @transform_3, window_bounds = array<i64: 28, 70>}, {pipeline_mode = #tpu.pipeline_mode<synchronous>, transform_indices = @transform_4, window_bounds = array<i64: 28, 1>}, {pipeline_mode = #tpu.pipeline_mode<synchronous>, transform_indices = @transform_5, window_bounds = array<i64: 14, 28>}, {pipeline_mode = #tpu.pipeline_mode<synchronous>, transform_indices = @transform_6, window_bounds = array<i64: 14, 1>}, {pipeline_mode = #tpu.pipeline_mode<synchronous>, transform_indices = @transform_7, window_bounds = array<i64: 7, 14>}, {pipeline_mode = #tpu.pipeline_mode<synchronous>, transform_indices = @transform_8, window_bounds = array<i64: 7, 1>}, {pipeline_mode = #tpu.pipeline_mode<synchronous>, transform_indices = @transform_9, window_bounds = array<i64: 1, 7>}, {pipeline_mode = #tpu.pipeline_mode<synchronous>, transform_indices = @transform_10, window_bounds = array<i64: 1, 1>}, {transform_indices = @transform_11, window_bounds = array<i64: 1, 256>}]} {
    %c0 = arith.constant 0 : index
    %c0_0 = arith.constant 0 : index
    %0 = vector.load %arg2[%c0, %c0_0] : memref<70x32xf32, #tpu.memory_space<vmem>>, vector<70x32xf32>
    %c0_1 = arith.constant 0 : index
    %c0_2 = arith.constant 0 : index
    %1 = vector.load %arg1[%c0_1, %c0_2] : memref<256x32xf32, #tpu.memory_space<vmem>>, vector<256x32xf32>
    %cst = arith.constant dense<0.000000e+00> : vector<70x256xf32>
    %2 = tpu.matmul %0, %1, %cst {dimension_numbers = #tpu.dot_dimension_numbers<[1], [1], [0], [0], [0, 0, 1, 0], [], []>} : vector<70x32xf32>, vector<256x32xf32>, vector<70x256xf32> -> vector<70x256xf32>
    %c0_3 = arith.constant 0 : index
    %c0_4 = arith.constant 0 : index
    %3 = vector.load %arg3[%c0_3, %c0_4] : memref<70x1xf32, #tpu.memory_space<vmem>>, vector<70x1xf32>
    %4 = vector.broadcast %3 : vector<70x1xf32> to vector<70x256xf32>
    %5 = arith.addf %2, %4 : vector<70x256xf32>
    %cst_5 = arith.constant 0.000000e+00 : f32
    %6 = vector.broadcast %cst_5 : f32 to vector<70x256xf32>
    %7 = arith.maximumf %5, %6 : vector<70x256xf32>
    %c0_6 = arith.constant 0 : index
    %c0_7 = arith.constant 0 : index
    %8 = vector.load %arg4[%c0_6, %c0_7] : memref<28x70xf32, #tpu.memory_space<vmem>>, vector<28x70xf32>
    %cst_8 = arith.constant dense<0.000000e+00> : vector<28x256xf32>
    %9 = tpu.matmul %8, %7, %cst_8 {dimension_numbers = #tpu.dot_dimension_numbers<[1], [0], [0], [1], [0, 0, 1, 1], [], []>} : vector<28x70xf32>, vector<70x256xf32>, vector<28x256xf32> -> vector<28x256xf32>
    %c0_9 = arith.constant 0 : index
    %c0_10 = arith.constant 0 : index
    %10 = vector.load %arg5[%c0_9, %c0_10] : memref<28x1xf32, #tpu.memory_space<vmem>>, vector<28x1xf32>
    %11 = vector.broadcast %10 : vector<28x1xf32> to vector<28x256xf32>
    %12 = arith.addf %9, %11 : vector<28x256xf32>
    %cst_11 = arith.constant 0.000000e+00 : f32
    %13 = vector.broadcast %cst_11 : f32 to vector<28x256xf32>
    %14 = arith.maximumf %12, %13 : vector<28x256xf32>
    %c0_12 = arith.constant 0 : index
    %c0_13 = arith.constant 0 : index
    %15 = vector.load %arg6[%c0_12, %c0_13] : memref<14x28xf32, #tpu.memory_space<vmem>>, vector<14x28xf32>
    %cst_14 = arith.constant dense<0.000000e+00> : vector<14x256xf32>
    %16 = tpu.matmul %15, %14, %cst_14 {dimension_numbers = #tpu.dot_dimension_numbers<[1], [0], [0], [1], [0, 0, 1, 1], [], []>} : vector<14x28xf32>, vector<28x256xf32>, vector<14x256xf32> -> vector<14x256xf32>
    %c0_15 = arith.constant 0 : index
    %c0_16 = arith.constant 0 : index
    %17 = vector.load %arg7[%c0_15, %c0_16] : memref<14x1xf32, #tpu.memory_space<vmem>>, vector<14x1xf32>
    %18 = vector.broadcast %17 : vector<14x1xf32> to vector<14x256xf32>
    %19 = arith.addf %16, %18 : vector<14x256xf32>
    %cst_17 = arith.constant 0.000000e+00 : f32
    %20 = vector.broadcast %cst_17 : f32 to vector<14x256xf32>
    %21 = arith.maximumf %19, %20 : vector<14x256xf32>
    %c0_18 = arith.constant 0 : index
    %c0_19 = arith.constant 0 : index
    %22 = vector.load %arg8[%c0_18, %c0_19] : memref<7x14xf32, #tpu.memory_space<vmem>>, vector<7x14xf32>
    %cst_20 = arith.constant dense<0.000000e+00> : vector<7x256xf32>
    %23 = tpu.matmul %22, %21, %cst_20 {dimension_numbers = #tpu.dot_dimension_numbers<[1], [0], [0], [1], [0, 0, 1, 1], [], []>} : vector<7x14xf32>, vector<14x256xf32>, vector<7x256xf32> -> vector<7x256xf32>
    %c0_21 = arith.constant 0 : index
    %c0_22 = arith.constant 0 : index
    %24 = vector.load %arg9[%c0_21, %c0_22] : memref<7x1xf32, #tpu.memory_space<vmem>>, vector<7x1xf32>
    %25 = vector.broadcast %24 : vector<7x1xf32> to vector<7x256xf32>
    %26 = arith.addf %23, %25 : vector<7x256xf32>
    %cst_23 = arith.constant 0.000000e+00 : f32
    %27 = vector.broadcast %cst_23 : f32 to vector<7x256xf32>
    %28 = arith.maximumf %26, %27 : vector<7x256xf32>
    %c0_24 = arith.constant 0 : index
    %c0_25 = arith.constant 0 : index
    %29 = vector.load %arg10[%c0_24, %c0_25] : memref<1x7xf32, #tpu.memory_space<vmem>>, vector<1x7xf32>
    %cst_26 = arith.constant dense<0.000000e+00> : vector<1x256xf32>
    %30 = tpu.matmul %29, %28, %cst_26 {dimension_numbers = #tpu.dot_dimension_numbers<[1], [0], [0], [1], [0, 0, 1, 1], [], []>} : vector<1x7xf32>, vector<7x256xf32>, vector<1x256xf32> -> vector<1x256xf32>
    %c0_27 = arith.constant 0 : index
    %c0_28 = arith.constant 0 : index
    %31 = vector.load %arg11[%c0_27, %c0_28] : memref<1x1xf32, #tpu.memory_space<vmem>>, vector<1x1xf32>
    %32 = vector.broadcast %31 : vector<1x1xf32> to vector<1x256xf32>
    %33 = arith.addf %30, %32 : vector<1x256xf32>
    %c0_29 = arith.constant 0 : index
    %c0_30 = arith.constant 0 : index
    %34 = vector.load %arg12[%c0_29, %c0_30] : memref<1x256xf32, #tpu.memory_space<vmem>>, vector<1x256xf32>
    tpu.vector_store %arg12[%c0_29, %c0_30], %33 {strides = array<i32>} : memref<1x256xf32, #tpu.memory_space<vmem>>, vector<1x256xf32>,
    return
  }
  func.func @transform_0(%arg0: i32) -> (i32, i32) {
    %c0_i32 = arith.constant 0 : i32
    %c0_i32_0 = arith.constant 0 : i32
    return %arg0, %c0_i32 : i32, i32
  }
  func.func @transform_1(%arg0: i32) -> (i32, i32) {
    %c0_i32 = arith.constant 0 : i32
    %c0_i32_0 = arith.constant 0 : i32
    %c0_i32_1 = arith.constant 0 : i32
    return %c0_i32, %c0_i32_0 : i32, i32
  }
  func.func @transform_2(%arg0: i32) -> (i32, i32) {
    %c0_i32 = arith.constant 0 : i32
    %c0_i32_0 = arith.constant 0 : i32
    %c0_i32_1 = arith.constant 0 : i32
    return %c0_i32, %c0_i32_0 : i32, i32
  }
  func.func @transform_3(%arg0: i32) -> (i32, i32) {
    %c0_i32 = arith.constant 0 : i32
    %c0_i32_0 = arith.constant 0 : i32
    %c0_i32_1 = arith.constant 0 : i32
    return %c0_i32, %c0_i32_0 : i32, i32
  }
  func.func @transform_4(%arg0: i32) -> (i32, i32) {
    %c0_i32 = arith.constant 0 : i32
    %c0_i32_0 = arith.constant 0 : i32
    %c0_i32_1 = arith.constant 0 : i32
    return %c0_i32, %c0_i32_0 : i32, i32
  }
  func.func @transform_5(%arg0: i32) -> (i32, i32) {
    %c0_i32 = arith.constant 0 : i32
    %c0_i32_0 = arith.constant 0 : i32
    %c0_i32_1 = arith.constant 0 : i32
    return %c0_i32, %c0_i32_0 : i32, i32
  }
  func.func @transform_6(%arg0: i32) -> (i32, i32) {
    %c0_i32 = arith.constant 0 : i32
    %c0_i32_0 = arith.constant 0 : i32
    %c0_i32_1 = arith.constant 0 : i32
    return %c0_i32, %c0_i32_0 : i32, i32
  }
  func.func @transform_7(%arg0: i32) -> (i32, i32) {
    %c0_i32 = arith.constant 0 : i32
    %c0_i32_0 = arith.constant 0 : i32
    %c0_i32_1 = arith.constant 0 : i32
    return %c0_i32, %c0_i32_0 : i32, i32
  }
  func.func @transform_8(%arg0: i32) -> (i32, i32) {
    %c0_i32 = arith.constant 0 : i32
    %c0_i32_0 = arith.constant 0 : i32
    %c0_i32_1 = arith.constant 0 : i32
    return %c0_i32, %c0_i32_0 : i32, i32
  }
  func.func @transform_9(%arg0: i32) -> (i32, i32) {
    %c0_i32 = arith.constant 0 : i32
    %c0_i32_0 = arith.constant 0 : i32
    %c0_i32_1 = arith.constant 0 : i32
    return %c0_i32, %c0_i32_0 : i32, i32
  }
  func.func @transform_10(%arg0: i32) -> (i32, i32) {
    %c0_i32 = arith.constant 0 : i32
    %c0_i32_0 = arith.constant 0 : i32
    %c0_i32_1 = arith.constant 0 : i32
    return %c0_i32, %c0_i32_0 : i32, i32
  }
  func.func @transform_11(%arg0: i32) -> (i32, i32) {
    %c0_i32 = arith.constant 0 : i32
    %c0_i32_0 = arith.constant 0 : i32
    return %c0_i32, %arg0 : i32, i32
  }
}

</mosaic_0001>

<llo_original>
// kernel: tpu_custom_call.1
$region0: #{tpu_custom_call.1}
  #allocation0 [shape = 'u32[]', space=smem, size = 0x4, offset = 0x4, fixed_abs, tag = 'smem constant byte address 0x4 - core index']
  #allocation1 [shape = 'u32[144,128]{1,0:T(1,128)}', space=vmem, size = 0x12000, scoped, tag = 'internal scratch']
  #allocation2 [shape = 'f32[1,1]{1,0:T(1,128)S(1)}', space=vmem, size = 0x200, scoped, tag = 'scoped memory for tpu_custom_call.1']
  %s0 = inlined_call_operand.vmem [shape: f32[256,32], index: 0, kind: input, shape index: {}]
  %s1 = inlined_call_operand.vmem [shape: f32[70,32], index: 1, kind: input, shape index: {}]
  %s2 = inlined_call_operand.vmem [shape: f32[70,1], index: 2, kind: input, shape index: {}]
  %s3 = inlined_call_operand.vmem [shape: f32[28,70], index: 3, kind: input, shape index: {}]
  %s4 = inlined_call_operand.vmem [shape: f32[28,1], index: 4, kind: input, shape index: {}]
  %s5 = inlined_call_operand.vmem [shape: f32[14,28], index: 5, kind: input, shape index: {}]
  %s6 = inlined_call_operand.vmem [shape: f32[14,1], index: 6, kind: input, shape index: {}]
  %s7 = inlined_call_operand.vmem [shape: f32[7,14], index: 7, kind: input, shape index: {}]
  %s8 = inlined_call_operand.vmem [shape: f32[7,1], index: 8, kind: input, shape index: {}]
  %s9 = inlined_call_operand.vmem [shape: f32[1,7], index: 9, kind: input, shape index: {}]
  %s10 = inlined_call_operand.<no memory space> [shape: f32[1,1], index: 10, kind: input, shape index: {}]
  %s11 = inlined_call_operand.hbm [shape: f32[1,256], index: 11, kind: output, shape index: {}]
  %s12 = sld [smem:[#allocation0]]
  $region54: #{tpu_custom_call.1} parent=0
    _
  %s14 = ssub.s32 1, %s12
  %s15 = scalar_select 0, %s14, %s12
  %v16 = vstv %s10
  %17 = vst [vmem:[#allocation2] sm:$0x1] %v16
  $region1: #{tpu_custom_call.1} parent=0
    #allocation3 [shape = 'u8[1024]{0}', space=vmem, size = 0x400, scoped, tag = 'output window, operand 0, single buffered']
    #allocation4 [shape = 's32[1]{0}', space=sflag, size = 0x4, scoped, tag = 'scoped memory for tpu_custom_call.1']
    %18 = vsyncpa [#allocation4], 0
    // Predicated region
    $region2: #{tpu_custom_call.1} parent=1 // pred_check
      _
    $region3: #{tpu_custom_call.1} parent=1 // pred_check_branch
      %20 = sbr.rel (0) target = $region5
    $region4: #{tpu_custom_call.1} parent=1 // pred_region
      _
    $region5: #{tpu_custom_call.1} parent=1 // pred_fallthru
      _
    // Predicated region
    $region6: #{tpu_custom_call.1} parent=1 // pred_check
      _
    $region7: #{tpu_custom_call.1} parent=1 // pred_check_branch
      %22 = sbr.rel (0) target = $region9
    $region8: #{tpu_custom_call.1} parent=1 // pred_region
      _
    $region9: #{tpu_custom_call.1} parent=1 // pred_fallthru
      _
    // Predicated region
    $region10: #{tpu_custom_call.1} parent=1 // pred_check
      _
    $region11: #{tpu_custom_call.1} parent=1 // pred_check_branch
      %24 = sbr.rel (0) target = $region13
    $region12: #{tpu_custom_call.1} parent=1 // pred_region
      _
    $region13: #{tpu_custom_call.1} parent=1 // pred_fallthru
      _
    // Predicated region
    $region14: #{tpu_custom_call.1} parent=1 // pred_check
      _
    $region15: #{tpu_custom_call.1} parent=1 // pred_check_branch
      %26 = sbr.rel (0) target = $region17
    $region16: #{tpu_custom_call.1} parent=1 // pred_region
      _
    $region17: #{tpu_custom_call.1} parent=1 // pred_fallthru
      _
    // Predicated region
    $region18: #{tpu_custom_call.1} parent=1 // pred_check
      _
    $region19: #{tpu_custom_call.1} parent=1 // pred_check_branch
      %28 = sbr.rel (0) target = $region21
    $region20: #{tpu_custom_call.1} parent=1 // pred_region
      _
    $region21: #{tpu_custom_call.1} parent=1 // pred_fallthru
      _
    // Predicated region
    $region22: #{tpu_custom_call.1} parent=1 // pred_check
      _
    $region23: #{tpu_custom_call.1} parent=1 // pred_check_branch
      %30 = sbr.rel (0) target = $region25
    $region24: #{tpu_custom_call.1} parent=1 // pred_region
      _
    $region25: #{tpu_custom_call.1} parent=1 // pred_fallthru
      _
    // Predicated region
    $region26: #{tpu_custom_call.1} parent=1 // pred_check
      _
    $region27: #{tpu_custom_call.1} parent=1 // pred_check_branch
      %32 = sbr.rel (0) target = $region29
    $region28: #{tpu_custom_call.1} parent=1 // pred_region
      _
    $region29: #{tpu_custom_call.1} parent=1 // pred_fallthru
      _
    // Predicated region
    $region30: #{tpu_custom_call.1} parent=1 // pred_check
      _
    $region31: #{tpu_custom_call.1} parent=1 // pred_check_branch
      %34 = sbr.rel (0) target = $region33
    $region32: #{tpu_custom_call.1} parent=1 // pred_region
      _
    $region33: #{tpu_custom_call.1} parent=1 // pred_fallthru
      _
    // Predicated region
    $region34: #{tpu_custom_call.1} parent=1 // pred_check
      _
    $region35: #{tpu_custom_call.1} parent=1 // pred_check_branch
      %36 = sbr.rel (0) target = $region37
    $region36: #{tpu_custom_call.1} parent=1 // pred_region
      _
    $region37: #{tpu_custom_call.1} parent=1 // pred_fallthru
      _
    // Predicated region
    $region38: #{tpu_custom_call.1} parent=1 // pred_check
      _
    $region39: #{tpu_custom_call.1} parent=1 // pred_check_branch
      %38 = sbr.rel (0) target = $region41
    $region40: #{tpu_custom_call.1} parent=1 // pred_region
      _
    $region41: #{tpu_custom_call.1} parent=1 // pred_fallthru
      _
    // Predicated region
    $region42: #{tpu_custom_call.1} parent=1 // pred_check
      _
    $region43: #{tpu_custom_call.1} parent=1 // pred_check_branch
      %40 = sbr.rel (0) target = $region45
    $region44: #{tpu_custom_call.1} parent=1 // pred_region
      _
    $region45: #{tpu_custom_call.1} parent=1 // pred_fallthru
      _
    %v41 = vld [vmem:[%s1] sm:$0xff]
    %v42 = vld [vmem:[%s1 + $0x8] sm:$0xff]
    %v43 = vld [vmem:[%s1 + $0x10] sm:$0xff]
    %v44 = vld [vmem:[%s1 + $0x18] sm:$0xff]
    %v45 = vld [vmem:[%s1 + $0x20] sm:$0xff]
    %v46 = vld [vmem:[%s1 + $0x28] sm:$0xff]
    %v47 = vld [vmem:[%s1 + $0x30] sm:$0xff]
    %v48 = vld [vmem:[%s1 + $0x38] sm:$0xff]
    %v49 = vld [vmem:[%s1 + $0x40] sm:$0x3f]
    %v50 = vld [vmem:[%s0] sm:$0xff]
    %v51 = vld [vmem:[%s0 + $0x8] sm:$0xff]
    %v52 = vld [vmem:[%s0 + $0x10] sm:$0xff]
    %v53 = vld [vmem:[%s0 + $0x18] sm:$0xff]
    %v54 = vld [vmem:[%s0 + $0x20] sm:$0xff]
    %v55 = vld [vmem:[%s0 + $0x28] sm:$0xff]
    %v56 = vld [vmem:[%s0 + $0x30] sm:$0xff]
    %v57 = vld [vmem:[%s0 + $0x38] sm:$0xff]
    %v58 = vld [vmem:[%s0 + $0x40] sm:$0xff]
    %v59 = vld [vmem:[%s0 + $0x48] sm:$0xff]
    %v60 = vld [vmem:[%s0 + $0x50] sm:$0xff]
    %v61 = vld [vmem:[%s0 + $0x58] sm:$0xff]
    %v62 = vld [vmem:[%s0 + $0x60] sm:$0xff]
    %v63 = vld [vmem:[%s0 + $0x68] sm:$0xff]
    %v64 = vld [vmem:[%s0 + $0x70] sm:$0xff]
    %v65 = vld [vmem:[%s0 + $0x78] sm:$0xff]
    %v66 = vld [vmem:[%s0 + $0x80] sm:$0xff]
    %v67 = vld [vmem:[%s0 + $0x88] sm:$0xff]
    %v68 = vld [vmem:[%s0 + $0x90] sm:$0xff]
    %v69 = vld [vmem:[%s0 + $0x98] sm:$0xff]
    %v70 = vld [vmem:[%s0 + $0xa0] sm:$0xff]
    %v71 = vld [vmem:[%s0 + $0xa8] sm:$0xff]
    %v72 = vld [vmem:[%s0 + $0xb0] sm:$0xff]
    %v73 = vld [vmem:[%s0 + $0xb8] sm:$0xff]
    %v74 = vld [vmem:[%s0 + $0xc0] sm:$0xff]
    %v75 = vld [vmem:[%s0 + $0xc8] sm:$0xff]
    %v76 = vld [vmem:[%s0 + $0xd0] sm:$0xff]
    %v77 = vld [vmem:[%s0 + $0xd8] sm:$0xff]
    %v78 = vld [vmem:[%s0 + $0xe0] sm:$0xff]
    %v79 = vld [vmem:[%s0 + $0xe8] sm:$0xff]
    %v80 = vld [vmem:[%s0 + $0xf0] sm:$0xff]
    %v81 = vld [vmem:[%s0 + $0xf8] sm:$0xff]
    %v82 = vld [vmem:[%s2] sm:$0xff]
    %v83 = vld [vmem:[%s2 + $0x8] sm:$0xff]
    %v84 = vld [vmem:[%s2 + $0x10] sm:$0xff]
    %v85 = vld [vmem:[%s2 + $0x18] sm:$0xff]
    %v86 = vld [vmem:[%s2 + $0x20] sm:$0xff]
    %v87 = vld [vmem:[%s2 + $0x28] sm:$0xff]
    %v88 = vld [vmem:[%s2 + $0x30] sm:$0xff]
    %v89 = vld [vmem:[%s2 + $0x38] sm:$0xff]
    %v90 = vld [vmem:[%s2 + $0x40] sm:$0x3f]
    %92 = vset.pattern.permute.xlu0 0
    %93 = vperm.xlu0 %92, %v82
    %v94 = vpop.permute.xlu0 %93
    %97 = vset.pattern.permute.xlu0 0
    %98 = vperm.xlu0 %97, %v83
    %v99 = vpop.permute.xlu0 %98
    %102 = vset.pattern.permute.xlu0 0
    %103 = vperm.xlu0 %102, %v84
    %v104 = vpop.permute.xlu0 %103
    %107 = vset.pattern.permute.xlu0 0
    %108 = vperm.xlu0 %107, %v85
    %v109 = vpop.permute.xlu0 %108
    %112 = vset.pattern.permute.xlu0 0
    %113 = vperm.xlu0 %112, %v86
    %v114 = vpop.permute.xlu0 %113
    %117 = vset.pattern.permute.xlu0 0
    %118 = vperm.xlu0 %117, %v87
    %v119 = vpop.permute.xlu0 %118
    %122 = vset.pattern.permute.xlu0 0
    %123 = vperm.xlu0 %122, %v88
    %v124 = vpop.permute.xlu0 %123
    %127 = vset.pattern.permute.xlu0 0
    %128 = vperm.xlu0 %127, %v89
    %v129 = vpop.permute.xlu0 %128
    %132 = vset.pattern.permute.xlu0 0
    %133 = vperm.xlu0 %132, %v90
    %v134 = vpop.permute.xlu0 %133
    %vm136 = vcmask 261120
    %v138 = vsel %vm136, %v41, 0
    %v141 = vsel %vm136, %v42, 0
    %v144 = vsel %vm136, %v43, 0
    %v147 = vsel %vm136, %v44, 0
    %v150 = vsel %vm136, %v45, 0
    %v153 = vsel %vm136, %v46, 0
    %v156 = vsel %vm136, %v47, 0
    %v159 = vsel %vm136, %v48, 0
    %v162 = vsel %vm136, %v49, 0
    %v165 = vsel %vm136, %v50, 0
    %v168 = vsel %vm136, %v51, 0
    %v171 = vsel %vm136, %v52, 0
    %v174 = vsel %vm136, %v53, 0
    %v177 = vsel %vm136, %v54, 0
    %v180 = vsel %vm136, %v55, 0
    %v183 = vsel %vm136, %v56, 0
    %v186 = vsel %vm136, %v57, 0
    %v189 = vsel %vm136, %v58, 0
    %v192 = vsel %vm136, %v59, 0
    %v195 = vsel %vm136, %v60, 0
    %v198 = vsel %vm136, %v61, 0
    %v201 = vsel %vm136, %v62, 0
    %v204 = vsel %vm136, %v63, 0
    %v207 = vsel %vm136, %v64, 0
    %v210 = vsel %vm136, %v65, 0
    %v213 = vsel %vm136, %v66, 0
    %v216 = vsel %vm136, %v67, 0
    %v219 = vsel %vm136, %v68, 0
    %v222 = vsel %vm136, %v69, 0
    %v225 = vsel %vm136, %v70, 0
    %v228 = vsel %vm136, %v71, 0
    %v231 = vsel %vm136, %v72, 0
    %v234 = vsel %vm136, %v73, 0
    %v237 = vsel %vm136, %v74, 0
    %v240 = vsel %vm136, %v75, 0
    %v243 = vsel %vm136, %v76, 0
    %v246 = vsel %vm136, %v77, 0
    %v249 = vsel %vm136, %v78, 0
    %v252 = vsel %vm136, %v79, 0
    %v255 = vsel %vm136, %v80, 0
    %v258 = vsel %vm136, %v81, 0
    %260 = vmatprep.subr.mxu0 0.0
    %261 = vmatpush1.xpose.msra.mxu0 %v210
    %262 = vmatprep.subr.mxu0 0.0
    %263 = vmatpush1.xpose.msra.mxu0 %v207
    %264 = vmatprep.subr.mxu0 0.0
    %265 = vmatpush1.xpose.msra.mxu0 %v204
    %266 = vmatprep.subr.mxu0 0.0
    %267 = vmatpush1.xpose.msra.mxu0 %v201
    %268 = vmatprep.subr.mxu0 0.0
    %269 = vmatpush1.xpose.msra.mxu0 %v198
    %270 = vmatprep.subr.mxu0 0.0
    %271 = vmatpush1.xpose.msra.mxu0 %v195
    %272 = vmatprep.subr.mxu0 0.0
    %273 = vmatpush1.xpose.msra.mxu0 %v192
    %274 = vmatprep.subr.mxu0 0.0
    %275 = vmatpush1.xpose.msra.mxu0 %v189
    %276 = vmatprep.subr.mxu0 0.0
    %277 = vmatpush1.xpose.msra.mxu0 %v186
    %278 = vmatprep.subr.mxu0 0.0
    %279 = vmatpush1.xpose.msra.mxu0 %v183
    %280 = vmatprep.subr.mxu0 0.0
    %281 = vmatpush1.xpose.msra.mxu0 %v180
    %282 = vmatprep.subr.mxu0 0.0
    %283 = vmatpush1.xpose.msra.mxu0 %v177
    %284 = vmatprep.subr.mxu0 0.0
    %285 = vmatpush1.xpose.msra.mxu0 %v174
    %286 = vmatprep.subr.mxu0 0.0
    %287 = vmatpush1.xpose.msra.mxu0 %v171
    %288 = vmatprep.subr.mxu0 0.0
    %289 = vmatpush1.xpose.msra.mxu0 %v168
    %290 = vmatprep.subr.mxu0 0.0
    %291 = vmatpush1.xpose.msra.mxu0 %v165
    %292 = vmatprep.subr.mxu0 0.0
    %293 = vmatpush2.xpose.msra.mxu0 %v258
    %294 = vmatprep.subr.mxu0 0.0
    %295 = vmatpush2.xpose.msra.mxu0 %v255
    %296 = vmatprep.subr.mxu0 0.0
    %297 = vmatpush2.xpose.msra.mxu0 %v252
    %298 = vmatprep.subr.mxu0 0.0
    %299 = vmatpush2.xpose.msra.mxu0 %v249
    %300 = vmatprep.subr.mxu0 0.0
    %301 = vmatpush2.xpose.msra.mxu0 %v246
    %302 = vmatprep.subr.mxu0 0.0
    %303 = vmatpush2.xpose.msra.mxu0 %v243
    %304 = vmatprep.subr.mxu0 0.0
    %305 = vmatpush2.xpose.msra.mxu0 %v240
    %306 = vmatprep.subr.mxu0 0.0
    %307 = vmatpush2.xpose.msra.mxu0 %v237
    %308 = vmatprep.subr.mxu0 0.0
    %309 = vmatpush2.xpose.msra.mxu0 %v234
    %310 = vmatprep.subr.mxu0 0.0
    %311 = vmatpush2.xpose.msra.mxu0 %v231
    %312 = vmatprep.subr.mxu0 0.0
    %313 = vmatpush2.xpose.msra.mxu0 %v228
    %314 = vmatprep.subr.mxu0 0.0
    %315 = vmatpush2.xpose.msra.mxu0 %v225
    %316 = vmatprep.subr.mxu0 0.0
    %317 = vmatpush2.xpose.msra.mxu0 %v222
    %318 = vmatprep.subr.mxu0 0.0
    %319 = vmatpush2.xpose.msra.mxu0 %v219
    %320 = vmatprep.subr.mxu0 0.0
    %321 = vmatpush2.xpose.msra.mxu0 %v216
    %322 = vmatprep.subr.mxu0 0.0
    %323 = vmatpush2.xpose.msra.mxu0 %v213
    %324 = vmatprep.mubr.f32.mxu0 0.0
    %325 = vmatmul.mubr.f32.gmra.mxu0 %v138
    %v326 = vpop.f32.mrf.mxu0
    %v327 = vadd.f32 %v94, %v326
    %v328 = vpop.f32.mrf.mxu0
    %v329 = vadd.f32 %v94, %v328
    %330 = vmatprep.mubr.f32.mxu0 0.0
    %331 = vmatmul.mubr.f32.gmra.mxu0 %v141
    %v332 = vpop.f32.mrf.mxu0
    %v333 = vadd.f32 %v99, %v332
    %v334 = vpop.f32.mrf.mxu0
    %v335 = vadd.f32 %v99, %v334
    %336 = vmatprep.mubr.f32.mxu0 0.0
    %337 = vmatmul.mubr.f32.gmra.mxu0 %v144
    %v338 = vpop.f32.mrf.mxu0
    %v339 = vadd.f32 %v104, %v338
    %v340 = vpop.f32.mrf.mxu0
    %v341 = vadd.f32 %v104, %v340
    %342 = vmatprep.mubr.f32.mxu0 0.0
    %343 = vmatmul.mubr.f32.gmra.mxu0 %v147
    %v344 = vpop.f32.mrf.mxu0
    %v345 = vadd.f32 %v109, %v344
    %v346 = vpop.f32.mrf.mxu0
    %v347 = vadd.f32 %v109, %v346
    %348 = vmatprep.mubr.f32.mxu0 0.0
    %349 = vmatmul.mubr.f32.gmra.mxu0 %v150
    %v350 = vpop.f32.mrf.mxu0
    %v351 = vadd.f32 %v114, %v350
    %v352 = vpop.f32.mrf.mxu0
    %v353 = vadd.f32 %v114, %v352
    %354 = vmatprep.mubr.f32.mxu0 0.0
    %355 = vmatmul.mubr.f32.gmra.mxu0 %v153
    %v356 = vpop.f32.mrf.mxu0
    %v357 = vadd.f32 %v119, %v356
    %v358 = vpop.f32.mrf.mxu0
    %v359 = vadd.f32 %v119, %v358
    %360 = vmatprep.mubr.f32.mxu0 0.0
    %361 = vmatmul.mubr.f32.gmra.mxu0 %v156
    %v362 = vpop.f32.mrf.mxu0
    %v363 = vadd.f32 %v124, %v362
    %v364 = vpop.f32.mrf.mxu0
    %v365 = vadd.f32 %v124, %v364
    %366 = vmatprep.mubr.f32.mxu0 0.0
    %367 = vmatmul.mubr.f32.gmra.mxu0 %v159
    %v368 = vpop.f32.mrf.mxu0
    %v369 = vadd.f32 %v129, %v368
    %v370 = vpop.f32.mrf.mxu0
    %v371 = vadd.f32 %v129, %v370
    %372 = vmatprep.mubr.f32.mxu0 0.0
    %373 = vmatmul.mubr.f32.gmra.mxu0 %v162
    %v374 = vpop.f32.mrf.mxu0
    %v375 = vadd.f32 %v134, %v374
    %v376 = vpop.f32.mrf.mxu0
    %v377 = vadd.f32 %v134, %v376
    %378 = vdwg.mxu0
    %v379 = vmax.f32 %v327, 0.0
    %v380 = vmax.f32 %v329, 0.0
    %v381 = vmax.f32 %v333, 0.0
    %v382 = vmax.f32 %v335, 0.0
    %v383 = vmax.f32 %v339, 0.0
    %v384 = vmax.f32 %v341, 0.0
    %v385 = vmax.f32 %v345, 0.0
    %v386 = vmax.f32 %v347, 0.0
    %v387 = vmax.f32 %v351, 0.0
    %v388 = vmax.f32 %v353, 0.0
    %v389 = vmax.f32 %v357, 0.0
    %v390 = vmax.f32 %v359, 0.0
    %v391 = vmax.f32 %v363, 0.0
    %v392 = vmax.f32 %v365, 0.0
    %v393 = vmax.f32 %v369, 0.0
    %v394 = vmax.f32 %v371, 0.0
    %v395 = vmax.f32 %v375, 0.0
    %v396 = vmax.f32 %v377, 0.0
    %v397 = vld [vmem:[%s3] sm:$0xff]
    %v398 = vld [vmem:[%s3 + $0x8] sm:$0xff]
    %v399 = vld [vmem:[%s3 + $0x10] sm:$0xff]
    %v400 = vld [vmem:[%s3 + $0x18] sm:$0xf]
    %v401 = vld [vmem:[%s4] sm:$0xff]
    %v402 = vld [vmem:[%s4 + $0x8] sm:$0xff]
    %v403 = vld [vmem:[%s4 + $0x10] sm:$0xff]
    %v404 = vld [vmem:[%s4 + $0x18] sm:$0xf]
    %406 = vset.pattern.permute.xlu0 0
    %407 = vperm.xlu0 %406, %v401
    %v408 = vpop.permute.xlu0 %407
    %411 = vset.pattern.permute.xlu0 0
    %412 = vperm.xlu0 %411, %v402
    %v413 = vpop.permute.xlu0 %412
    %416 = vset.pattern.permute.xlu0 0
    %417 = vperm.xlu0 %416, %v403
    %v418 = vpop.permute.xlu0 %417
    %421 = vset.pattern.permute.xlu0 0
    %422 = vperm.xlu0 %421, %v404
    %v423 = vpop.permute.xlu0 %422
    %vm425 = vcmask 572416
    %v427 = vsel %vm425, %v397, 0
    %v430 = vsel %vm425, %v398, 0
    %v433 = vsel %vm425, %v399, 0
    %v436 = vsel %vm425, %v400, 0
    %vm438 = vcmask 1045504
    %v440 = vsel %vm438, %v395, 0
    %v443 = vsel %vm438, %v396, 0
    %445 = vmatprep.subr.mxu0 0.0
    %446 = vmatpush1.msra.mxu0 0.0
    %447 = vmatprep.subr.mxu0 0.0
    %448 = vmatpush1.msra.mxu0 0.0
    %449 = vmatprep.subr.mxu0 0.0
    %450 = vmatpush1.msra.mxu0 0.0
    %451 = vmatprep.subr.mxu0 0.0
    %452 = vmatpush1.msra.mxu0 0.0
    %453 = vmatprep.subr.mxu0 0.0
    %454 = vmatpush1.msra.mxu0 0.0
    %455 = vmatprep.subr.mxu0 0.0
    %456 = vmatpush1.msra.mxu0 0.0
    %457 = vmatprep.subr.mxu0 0.0
    %458 = vmatpush1.msra.mxu0 0.0
    %459 = vmatprep.subr.mxu0 %v443
    %460 = vmatpush1.msra.mxu0 %v440
    %461 = vmatprep.subr.mxu0 %v394
    %462 = vmatpush1.msra.mxu0 %v393
    %463 = vmatprep.subr.mxu0 %v392
    %464 = vmatpush1.msra.mxu0 %v391
    %465 = vmatprep.subr.mxu0 %v390
    %466 = vmatpush1.msra.mxu0 %v389
    %467 = vmatprep.subr.mxu0 %v388
    %468 = vmatpush1.msra.mxu0 %v387
    %469 = vmatprep.subr.mxu0 %v386
    %470 = vmatpush1.msra.mxu0 %v385
    %471 = vmatprep.subr.mxu0 %v384
    %472 = vmatpush1.msra.mxu0 %v383
    %473 = vmatprep.subr.mxu0 %v382
    %474 = vmatpush1.msra.mxu0 %v381
    %475 = vmatprep.subr.mxu0 %v380
    %476 = vmatpush1.msra.mxu0 %v379
    %477 = vmatprep.subr.mxu0 0.0
    %478 = vmatpush2.msra.mxu0 0.0
    %479 = vmatprep.subr.mxu0 0.0
    %480 = vmatpush2.msra.mxu0 0.0
    %481 = vmatprep.subr.mxu0 0.0
    %482 = vmatpush2.msra.mxu0 0.0
    %483 = vmatprep.subr.mxu0 0.0
    %484 = vmatpush2.msra.mxu0 0.0
    %485 = vmatprep.subr.mxu0 0.0
    %486 = vmatpush2.msra.mxu0 0.0
    %487 = vmatprep.subr.mxu0 0.0
    %488 = vmatpush2.msra.mxu0 0.0
    %489 = vmatprep.subr.mxu0 0.0
    %490 = vmatpush2.msra.mxu0 0.0
    %491 = vmatprep.subr.mxu0 0.0
    %492 = vmatpush2.msra.mxu0 0.0
    %493 = vmatprep.subr.mxu0 0.0
    %494 = vmatpush2.msra.mxu0 0.0
    %495 = vmatprep.subr.mxu0 0.0
    %496 = vmatpush2.msra.mxu0 0.0
    %497 = vmatprep.subr.mxu0 0.0
    %498 = vmatpush2.msra.mxu0 0.0
    %499 = vmatprep.subr.mxu0 0.0
    %500 = vmatpush2.msra.mxu0 0.0
    %501 = vmatprep.subr.mxu0 0.0
    %502 = vmatpush2.msra.mxu0 0.0
    %503 = vmatprep.subr.mxu0 0.0
    %504 = vmatpush2.msra.mxu0 0.0
    %505 = vmatprep.subr.mxu0 0.0
    %506 = vmatpush2.msra.mxu0 0.0
    %507 = vmatprep.subr.mxu0 0.0
    %508 = vmatpush2.msra.mxu0 0.0
    %509 = vmatprep.mubr.f32.mxu0 0.0
    %510 = vmatmul.mubr.f32.gmra.mxu0 %v427
    %v511 = vpop.f32.mrf.mxu0
    %v512 = vadd.f32 %v408, %v511
    %v513 = vpop.f32.mrf.mxu0
    %v514 = vadd.f32 %v408, %v513
    %515 = vmatprep.mubr.f32.mxu0 0.0
    %516 = vmatmul.mubr.f32.gmra.mxu0 %v430
    %v517 = vpop.f32.mrf.mxu0
    %v518 = vadd.f32 %v413, %v517
    %v519 = vpop.f32.mrf.mxu0
    %v520 = vadd.f32 %v413, %v519
    %521 = vmatprep.mubr.f32.mxu0 0.0
    %522 = vmatmul.mubr.f32.gmra.mxu0 %v433
    %v523 = vpop.f32.mrf.mxu0
    %v524 = vadd.f32 %v418, %v523
    %v525 = vpop.f32.mrf.mxu0
    %v526 = vadd.f32 %v418, %v525
    %527 = vmatprep.mubr.f32.mxu0 0.0
    %528 = vmatmul.mubr.f32.gmra.mxu0 %v436
    %v529 = vpop.f32.mrf.mxu0
    %v530 = vadd.f32 %v423, %v529
    %v531 = vpop.f32.mrf.mxu0
    %v532 = vadd.f32 %v423, %v531
    %533 = vdwg.mxu0
    %v534 = vmax.f32 %v512, 0.0
    %v535 = vmax.f32 %v514, 0.0
    %v536 = vmax.f32 %v518, 0.0
    %v537 = vmax.f32 %v520, 0.0
    %v538 = vmax.f32 %v524, 0.0
    %v539 = vmax.f32 %v526, 0.0
    %v540 = vmax.f32 %v530, 0.0
    %v541 = vmax.f32 %v532, 0.0
    %v542 = vld [vmem:[%s5] sm:$0xff]
    %v543 = vld [vmem:[%s5 + $0x8] sm:$0x3f]
    %v544 = vld [vmem:[%s6] sm:$0xff]
    %v545 = vld [vmem:[%s6 + $0x8] sm:$0x3f]
    %547 = vset.pattern.permute.xlu0 0
    %548 = vperm.xlu0 %547, %v544
    %v549 = vpop.permute.xlu0 %548
    %552 = vset.pattern.permute.xlu0 0
    %553 = vperm.xlu0 %552, %v545
    %v554 = vpop.permute.xlu0 %553
    %vm556 = vcmask 228352
    %v558 = vsel %vm556, %v542, 0
    %v561 = vsel %vm556, %v543, 0
    %vm563 = vcmask 1043456
    %v565 = vsel %vm563, %v540, 0
    %v568 = vsel %vm563, %v541, 0
    %570 = vmatprep.subr.mxu0 0.0
    %571 = vmatpush1.msra.mxu0 0.0
    %572 = vmatprep.subr.mxu0 0.0
    %573 = vmatpush1.msra.mxu0 0.0
    %574 = vmatprep.subr.mxu0 0.0
    %575 = vmatpush1.msra.mxu0 0.0
    %576 = vmatprep.subr.mxu0 0.0
    %577 = vmatpush1.msra.mxu0 0.0
    %578 = vmatprep.subr.mxu0 0.0
    %579 = vmatpush1.msra.mxu0 0.0
    %580 = vmatprep.subr.mxu0 0.0
    %581 = vmatpush1.msra.mxu0 0.0
    %582 = vmatprep.subr.mxu0 0.0
    %583 = vmatpush1.msra.mxu0 0.0
    %584 = vmatprep.subr.mxu0 0.0
    %585 = vmatpush1.msra.mxu0 0.0
    %586 = vmatprep.subr.mxu0 0.0
    %587 = vmatpush1.msra.mxu0 0.0
    %588 = vmatprep.subr.mxu0 0.0
    %589 = vmatpush1.msra.mxu0 0.0
    %590 = vmatprep.subr.mxu0 0.0
    %591 = vmatpush1.msra.mxu0 0.0
    %592 = vmatprep.subr.mxu0 0.0
    %593 = vmatpush1.msra.mxu0 0.0
    %594 = vmatprep.subr.mxu0 %v568
    %595 = vmatpush1.msra.mxu0 %v565
    %596 = vmatprep.subr.mxu0 %v539
    %597 = vmatpush1.msra.mxu0 %v538
    %598 = vmatprep.subr.mxu0 %v537
    %599 = vmatpush1.msra.mxu0 %v536
    %600 = vmatprep.subr.mxu0 %v535
    %601 = vmatpush1.msra.mxu0 %v534
    %602 = vmatprep.subr.mxu0 0.0
    %603 = vmatpush2.msra.mxu0 0.0
    %604 = vmatprep.subr.mxu0 0.0
    %605 = vmatpush2.msra.mxu0 0.0
    %606 = vmatprep.subr.mxu0 0.0
    %607 = vmatpush2.msra.mxu0 0.0
    %608 = vmatprep.subr.mxu0 0.0
    %609 = vmatpush2.msra.mxu0 0.0
    %610 = vmatprep.subr.mxu0 0.0
    %611 = vmatpush2.msra.mxu0 0.0
    %612 = vmatprep.subr.mxu0 0.0
    %613 = vmatpush2.msra.mxu0 0.0
    %614 = vmatprep.subr.mxu0 0.0
    %615 = vmatpush2.msra.mxu0 0.0
    %616 = vmatprep.subr.mxu0 0.0
    %617 = vmatpush2.msra.mxu0 0.0
    %618 = vmatprep.subr.mxu0 0.0
    %619 = vmatpush2.msra.mxu0 0.0
    %620 = vmatprep.subr.mxu0 0.0
    %621 = vmatpush2.msra.mxu0 0.0
    %622 = vmatprep.subr.mxu0 0.0
    %623 = vmatpush2.msra.mxu0 0.0
    %624 = vmatprep.subr.mxu0 0.0
    %625 = vmatpush2.msra.mxu0 0.0
    %626 = vmatprep.subr.mxu0 0.0
    %627 = vmatpush2.msra.mxu0 0.0
    %628 = vmatprep.subr.mxu0 0.0
    %629 = vmatpush2.msra.mxu0 0.0
    %630 = vmatprep.subr.mxu0 0.0
    %631 = vmatpush2.msra.mxu0 0.0
    %632 = vmatprep.subr.mxu0 0.0
    %633 = vmatpush2.msra.mxu0 0.0
    %634 = vmatprep.mubr.f32.mxu0 0.0
    %635 = vmatmul.mubr.f32.gmra.mxu0 %v558
    %v636 = vpop.f32.mrf.mxu0
    %v637 = vadd.f32 %v549, %v636
    %v638 = vpop.f32.mrf.mxu0
    %v639 = vadd.f32 %v549, %v638
    %640 = vmatprep.mubr.f32.mxu0 0.0
    %641 = vmatmul.mubr.f32.gmra.mxu0 %v561
    %v642 = vpop.f32.mrf.mxu0
    %v643 = vadd.f32 %v554, %v642
    %v644 = vpop.f32.mrf.mxu0
    %v645 = vadd.f32 %v554, %v644
    %646 = vdwg.mxu0
    %v647 = vmax.f32 %v637, 0.0
    %v648 = vmax.f32 %v639, 0.0
    %v649 = vmax.f32 %v643, 0.0
    %v650 = vmax.f32 %v645, 0.0
    %v651 = vld [vmem:[%s7] sm:$0x7f]
    %v652 = vld [vmem:[%s8] sm:$0x7f]
    %654 = vset.pattern.permute.xlu0 0
    %655 = vperm.xlu0 %654, %v652
    %v656 = vpop.permute.xlu0 %655
    %vm658 = vcmask 113664
    %v660 = vsel %vm658, %v651, 0
    %v663 = vsel %vm438, %v649, 0
    %v666 = vsel %vm438, %v650, 0
    %668 = vmatprep.subr.mxu0 0.0
    %669 = vmatpush1.msra.mxu0 0.0
    %670 = vmatprep.subr.mxu0 0.0
    %671 = vmatpush1.msra.mxu0 0.0
    %672 = vmatprep.subr.mxu0 0.0
    %673 = vmatpush1.msra.mxu0 0.0
    %674 = vmatprep.subr.mxu0 0.0
    %675 = vmatpush1.msra.mxu0 0.0
    %676 = vmatprep.subr.mxu0 0.0
    %677 = vmatpush1.msra.mxu0 0.0
    %678 = vmatprep.subr.mxu0 0.0
    %679 = vmatpush1.msra.mxu0 0.0
    %680 = vmatprep.subr.mxu0 0.0
    %681 = vmatpush1.msra.mxu0 0.0
    %682 = vmatprep.subr.mxu0 0.0
    %683 = vmatpush1.msra.mxu0 0.0
    %684 = vmatprep.subr.mxu0 0.0
    %685 = vmatpush1.msra.mxu0 0.0
    %686 = vmatprep.subr.mxu0 0.0
    %687 = vmatpush1.msra.mxu0 0.0
    %688 = vmatprep.subr.mxu0 0.0
    %689 = vmatpush1.msra.mxu0 0.0
    %690 = vmatprep.subr.mxu0 0.0
    %691 = vmatpush1.msra.mxu0 0.0
    %692 = vmatprep.subr.mxu0 0.0
    %693 = vmatpush1.msra.mxu0 0.0
    %694 = vmatprep.subr.mxu0 0.0
    %695 = vmatpush1.msra.mxu0 0.0
    %696 = vmatprep.subr.mxu0 %v666
    %697 = vmatpush1.msra.mxu0 %v663
    %698 = vmatprep.subr.mxu0 %v648
    %699 = vmatpush1.msra.mxu0 %v647
    %700 = vmatprep.subr.mxu0 0.0
    %701 = vmatpush2.msra.mxu0 0.0
    %702 = vmatprep.subr.mxu0 0.0
    %703 = vmatpush2.msra.mxu0 0.0
    %704 = vmatprep.subr.mxu0 0.0
    %705 = vmatpush2.msra.mxu0 0.0
    %706 = vmatprep.subr.mxu0 0.0
    %707 = vmatpush2.msra.mxu0 0.0
    %708 = vmatprep.subr.mxu0 0.0
    %709 = vmatpush2.msra.mxu0 0.0
    %710 = vmatprep.subr.mxu0 0.0
    %711 = vmatpush2.msra.mxu0 0.0
    %712 = vmatprep.subr.mxu0 0.0
    %713 = vmatpush2.msra.mxu0 0.0
    %714 = vmatprep.subr.mxu0 0.0
    %715 = vmatpush2.msra.mxu0 0.0
    %716 = vmatprep.subr.mxu0 0.0
    %717 = vmatpush2.msra.mxu0 0.0
    %718 = vmatprep.subr.mxu0 0.0
    %719 = vmatpush2.msra.mxu0 0.0
    %720 = vmatprep.subr.mxu0 0.0
    %721 = vmatpush2.msra.mxu0 0.0
    %722 = vmatprep.subr.mxu0 0.0
    %723 = vmatpush2.msra.mxu0 0.0
    %724 = vmatprep.subr.mxu0 0.0
    %725 = vmatpush2.msra.mxu0 0.0
    %726 = vmatprep.subr.mxu0 0.0
    %727 = vmatpush2.msra.mxu0 0.0
    %728 = vmatprep.subr.mxu0 0.0
    %729 = vmatpush2.msra.mxu0 0.0
    %730 = vmatprep.subr.mxu0 0.0
    %731 = vmatpush2.msra.mxu0 0.0
    %732 = vmatprep.mubr.f32.mxu0 0.0
    %733 = vmatmul.mubr.f32.gmra.mxu0 %v660
    %v734 = vpop.f32.mrf.mxu0
    %v735 = vadd.f32 %v656, %v734
    %v736 = vpop.f32.mrf.mxu0
    %v737 = vadd.f32 %v656, %v736
    %738 = vdwg.mxu0
    %v739 = vmax.f32 %v735, 0.0
    %v740 = vmax.f32 %v737, 0.0
    %v741 = vld [vmem:[%s9] sm:$0x1]
    %v742 = vld [vmem:[#allocation2] sm:$0x1]
    %744 = vset.pattern.permute.xlu0 0
    %745 = vperm.xlu0 %744, %v742
    %v746 = vpop.permute.xlu0 %745
    %v748 = vlaneseq
    %v749 = vshrl.u32 %v748, 7
    %v750 = vsub.s32 0, %v749
    %v751 = vrot.slane %v746, %v750
    %vm752 = vcmask 56320
    %v754 = vsel %vm752, %v741, 0
    %vm756 = vcmask 1046528
    %v758 = vsel %vm756, %v739, 0
    %v761 = vsel %vm756, %v740, 0
    %763 = vmatprep.subr.mxu0 0.0
    %764 = vmatpush1.msra.mxu0 0.0
    %765 = vmatprep.subr.mxu0 0.0
    %766 = vmatpush1.msra.mxu0 0.0
    %767 = vmatprep.subr.mxu0 0.0
    %768 = vmatpush1.msra.mxu0 0.0
    %769 = vmatprep.subr.mxu0 0.0
    %770 = vmatpush1.msra.mxu0 0.0
    %771 = vmatprep.subr.mxu0 0.0
    %772 = vmatpush1.msra.mxu0 0.0
    %773 = vmatprep.subr.mxu0 0.0
    %774 = vmatpush1.msra.mxu0 0.0
    %775 = vmatprep.subr.mxu0 0.0
    %776 = vmatpush1.msra.mxu0 0.0
    %777 = vmatprep.subr.mxu0 0.0
    %778 = vmatpush1.msra.mxu0 0.0
    %779 = vmatprep.subr.mxu0 0.0
    %780 = vmatpush1.msra.mxu0 0.0
    %781 = vmatprep.subr.mxu0 0.0
    %782 = vmatpush1.msra.mxu0 0.0
    %783 = vmatprep.subr.mxu0 0.0
    %784 = vmatpush1.msra.mxu0 0.0
    %785 = vmatprep.subr.mxu0 0.0
    %786 = vmatpush1.msra.mxu0 0.0
    %787 = vmatprep.subr.mxu0 0.0
    %788 = vmatpush1.msra.mxu0 0.0
    %789 = vmatprep.subr.mxu0 0.0
    %790 = vmatpush1.msra.mxu0 0.0
    %791 = vmatprep.subr.mxu0 0.0
    %792 = vmatpush1.msra.mxu0 0.0
    %793 = vmatprep.subr.mxu0 %v761
    %794 = vmatpush1.msra.mxu0 %v758
    %795 = vmatprep.subr.mxu0 0.0
    %796 = vmatpush2.msra.mxu0 0.0
    %797 = vmatprep.subr.mxu0 0.0
    %798 = vmatpush2.msra.mxu0 0.0
    %799 = vmatprep.subr.mxu0 0.0
    %800 = vmatpush2.msra.mxu0 0.0
    %801 = vmatprep.subr.mxu0 0.0
    %802 = vmatpush2.msra.mxu0 0.0
    %803 = vmatprep.subr.mxu0 0.0
    %804 = vmatpush2.msra.mxu0 0.0
    %805 = vmatprep.subr.mxu0 0.0
    %806 = vmatpush2.msra.mxu0 0.0
    %807 = vmatprep.subr.mxu0 0.0
    %808 = vmatpush2.msra.mxu0 0.0
    %809 = vmatprep.subr.mxu0 0.0
    %810 = vmatpush2.msra.mxu0 0.0
    %811 = vmatprep.subr.mxu0 0.0
    %812 = vmatpush2.msra.mxu0 0.0
    %813 = vmatprep.subr.mxu0 0.0
    %814 = vmatpush2.msra.mxu0 0.0
    %815 = vmatprep.subr.mxu0 0.0
    %816 = vmatpush2.msra.mxu0 0.0
    %817 = vmatprep.subr.mxu0 0.0
    %818 = vmatpush2.msra.mxu0 0.0
    %819 = vmatprep.subr.mxu0 0.0
    %820 = vmatpush2.msra.mxu0 0.0
    %821 = vmatprep.subr.mxu0 0.0
    %822 = vmatpush2.msra.mxu0 0.0
    %823 = vmatprep.subr.mxu0 0.0
    %824 = vmatpush2.msra.mxu0 0.0
    %825 = vmatprep.subr.mxu0 0.0
    %826 = vmatpush2.msra.mxu0 0.0
    %827 = vmatprep.mubr.f32.mxu0 0.0
    %828 = vmatmul.mubr.f32.gmra.mxu0 %v754
    %v829 = vpop.f32.mrf.mxu0
    %v830 = vadd.f32 %v751, %v829
    %v831 = vpop.f32.mrf.mxu0
    %v832 = vadd.f32 %v751, %v831
    %833 = vdwg.mxu0
    %v836 = vcombine.low %v830, %v832
    %v838 = vunpack.c.l.s4 1966171168
    %v839 = vunpack.c.0.s8 %v838
    %v840 = vlaneseq
    %v841 = vshrl.u32 %v840, 7
    %v842 = vsub.s32 %v839, %v841
    %v843 = vrot.slane %v836, %v842
    %v845 = vunpack.c.l.s4 1966171168
    %v846 = vunpack.c.0.s8 %v845
    %v847 = vlaneseq
    %v848 = vshrl.u32 %v847, 7
    %v849 = vsub.s32 %v846, %v848
    %v850 = vrot.slane %v843, %v849
    %v852 = vlaneseq
    %vm853 = vcmp.ge.s32.totalorder %v852, 0
    %vm854 = vcmp.lt.s32.totalorder %v852, 256
    %vm855 = vmand %vm853, %vm854
    %856 = vst.msk [vmem:[#allocation3] sm:$0x3] %vm855, %v850
    // Predicated region
    $region46: #{tpu_custom_call.1} parent=1 // pred_check
      _
    $region47: #{tpu_custom_call.1} parent=1 // pred_check_branch
      %858 = sbr.rel (0) target = $region49
    $region48: #{tpu_custom_call.1} parent=1 // pred_region
      %s860 = ssub.s32 32, 32
      %861 = vsyncadd [#allocation4], %s860
      %s863 = sshll.u32 [#allocation3], 4
      %s864 = int_to_ptr.vmem [resolvable:$true] %s863
      %866 = dma.vmem_to_hbm [thread:$0]  %s864, 32, %s11, [#allocation4]
    $region49: #{tpu_custom_call.1} parent=1 // pred_fallthru
      _
    // Predicated region
    $region50: #{tpu_custom_call.1} parent=1 // pred_check
      _
    $region51: #{tpu_custom_call.1} parent=1 // pred_check_branch
      %868 = sbr.rel (0) target = $region53
    $region52: #{tpu_custom_call.1} parent=1 // pred_region
      %869 = dma.done [#allocation4], 32
    $region53: #{tpu_custom_call.1} parent=1 // pred_fallthru
      _
    %870 = vsyncpa [#allocation4], 1

</llo_original>
